<compile_context>
chip_gen: v7x
topology: tpu7x:2x2x1
jax: 0.10.0
libtpu: 0.0.40
codegen_flags: <defaults>
</compile_context>

<pallas_src>
import functools

import jax
import jax.numpy as jnp
from jax import lax
from jax.experimental import pallas as pl
from jax.experimental.pallas import tpu as pltpu


def _resblock_kernel_flat(x_ref, w_ref, o_ref, *, n_batch, hw):
    """Single grid step over the whole batch (v5e/v6e path).

    x_ref: (K_pad, n_batch*hw)  im2col'd input (+ ones row, + zero pad rows)
    w_ref: (Cout, K_pad)        conv weights (+ bias column, + zero pad cols)
    o_ref: (n_batch, Cout, hw)  output tile (lane-dense along hw)
    """
    acc = jnp.dot(w_ref[...], x_ref[...], preferred_element_type=jnp.float32)
    acc = jnp.maximum(acc, 0.0).astype(o_ref.dtype)
    # hw is a multiple of 128, so these lane slices stay vreg-aligned and the
    # stores are unmasked full-lane vst.
    for n in range(n_batch):
        o_ref[n] = acc[:, n * hw:(n + 1) * hw]


def _resblock_kernel_per_batch(x_ref, w_ref, o_ref):
    """One batch element per grid step (v7x path, CORE_PARALLEL over batch).

    x_ref: (1, K_pad, hw)   w_ref: (Cout, K_pad)   o_ref: (1, Cout, hw)
    """
    acc = jnp.dot(w_ref[...], x_ref[0], preferred_element_type=jnp.float32)
    o_ref[0] = jnp.maximum(acc, 0.0).astype(o_ref.dtype)


def _round_up(x, m):
    return -(-x // m) * m


def _has_two_tensorcores():
    """v7x has 2 TensorCores per chip; v5e/v6e have 1."""
    try:
        kind = jax.devices()[0].device_kind.lower()
    except Exception:
        return False
    return ("v7" in kind) or ("7x" in kind)


@functools.partial(jax.jit,
                   static_argnames=("padding", "dilation", "core_parallel_batch"))
def resblock_forward(x_nchw, weight_oihw, bias, *, padding, dilation,
                     core_parallel_batch=False):
    """relu(conv2d(x, w, b, stride=1, padding, dilation)) matching PyTorch."""
    N, Cin, H, W = x_nchw.shape
    Cout = weight_oihw.shape[0]
    # kernel_size=3, stride=1 are fixed by the module definition.
    H_out = H + 2 * padding - 2 * dilation
    W_out = W + 2 * padding - 2 * dilation
    HW = H_out * W_out
    HW_pad = _round_up(HW, 128)      # keep output stores unmasked full-lane
    K = 9 * Cin + 1                  # +1 = ones row carrying the bias
    K_pad = _round_up(K, 8)          # sublane-aligned operand tiles
    dt = x_nchw.dtype

    # --- wrapper-side im2col (plain XLA slices; fuses under this jit) -------
    x_pad = jnp.pad(
        x_nchw, ((0, 0), (0, 0), (padding, padding), (padding, padding)))
    patches = []
    for kh in range(3):
        for kw in range(3):
            patches.append(
                x_pad[:, :,
                      kh * dilation:kh * dilation + H_out,
                      kw * dilation:kw * dilation + W_out])      # (N, Cin, Ho, Wo)
    # tap-major, channel-minor rows -> (N, 9*Cin, HW)
    x_col = jnp.concatenate(patches, axis=1).reshape(N, 9 * Cin, HW)
    ones = jnp.ones((N, 1, HW), dt)                              # bias carrier row
    x_col = jnp.concatenate([x_col, ones], axis=1)               # (N, K, HW)
    x_col = jnp.pad(x_col, ((0, 0), (0, K_pad - K), (0, HW_pad - HW)))

    # Weights: OIHW -> (O, kh, kw, I) -> (O, 9*I); append bias column; pad K.
    w_mat = jnp.transpose(weight_oihw, (0, 2, 3, 1)).reshape(Cout, 9 * Cin)
    w_mat = jnp.concatenate([w_mat, bias.reshape(Cout, 1).astype(dt)], axis=1)
    w_mat = jnp.pad(w_mat, ((0, 0), (0, K_pad - K)))             # (Cout, K_pad)

    itemsize = jnp.dtype(dt).itemsize
    cost = pl.CostEstimate(
        flops=2 * Cout * K_pad * N * HW_pad,
        transcendentals=0,
        bytes_accessed=(K_pad * N * HW_pad + Cout * K_pad + N * Cout * HW_pad)
        * itemsize)

    if core_parallel_batch:
        # v7x: 2-step batch grid sharded across the two TensorCores.
        out_flat = pl.pallas_call(
            _resblock_kernel_per_batch,
            out_shape=jax.ShapeDtypeStruct((N, Cout, HW_pad), dt),
            grid_spec=pltpu.PrefetchScalarGridSpec(
                num_scalar_prefetch=0,
                grid=(N,),
                in_specs=[
                    pl.BlockSpec((1, K_pad, HW_pad), lambda n: (n, 0, 0)),
                    pl.BlockSpec((Cout, K_pad), lambda n: (0, 0)),
                ],
                out_specs=pl.BlockSpec((1, Cout, HW_pad), lambda n: (n, 0, 0)),
            ),
            compiler_params=pltpu.CompilerParams(
                dimension_semantics=(pltpu.CORE_PARALLEL,)),
            cost_estimate=cost,
        )(x_col, w_mat)
    else:
        # v5e/v6e: collapse the batch into the lane axis -> ONE grid step.
        x_flat = jnp.transpose(x_col, (1, 0, 2)).reshape(K_pad, N * HW_pad)
        kernel = functools.partial(_resblock_kernel_flat, n_batch=N, hw=HW_pad)
        out_flat = pl.pallas_call(
            kernel,
            out_shape=jax.ShapeDtypeStruct((N, Cout, HW_pad), dt),
            grid_spec=pltpu.PrefetchScalarGridSpec(
                num_scalar_prefetch=0,
                grid=(1,),
                in_specs=[
                    pl.BlockSpec((K_pad, N * HW_pad), lambda i: (0, 0)),
                    pl.BlockSpec((Cout, K_pad), lambda i: (0, 0)),
                ],
                out_specs=pl.BlockSpec((N, Cout, HW_pad), lambda i: (0, 0, 0)),
            ),
            compiler_params=pltpu.CompilerParams(
                dimension_semantics=("arbitrary",)),
            cost_estimate=cost,
        )(x_flat, w_mat)

    # Drop lane padding, then (N, Cout, HW) -> NCHW is a free reshape.
    return out_flat[:, :, :HW].reshape(N, Cout, H_out, W_out)


if __name__ == "__main__":
    # Small shapes consistent with the module: batch=2, ch_in=4, ch_out=8,
    # 16x16 spatial, padding=2, dilation=2 (keeps spatial size at 16).
    N, Cin, Cout, H, W = 2, 4, 8, 16, 16
    padding, dilation = 2, 2

    key = jax.random.PRNGKey(0)
    kx, kw, kb = jax.random.split(key, 3)
    x = jax.random.normal(kx, (N, Cin, H, W), dtype=jnp.float32)
    # Deterministic Kaiming-uniform-like init (shapes from nn.Conv2d(ch_in, ch_out, 3)).
    fan_in = Cin * 3 * 3
    bound = 1.0 / jnp.sqrt(fan_in)
    weight = jax.random.uniform(kw, (Cout, Cin, 3, 3), minval=-bound,
                                maxval=bound, dtype=jnp.float32)
    bias = jax.random.uniform(kb, (Cout,), minval=-bound, maxval=bound,
                              dtype=jnp.float32)

    out = resblock_forward(x, weight, bias, padding=padding, dilation=dilation,
                           core_parallel_batch=_has_two_tensorcores())
    out = jax.block_until_ready(out)

    # Cross-check against XLA's conv (same semantics as torch Conv2d + relu).
    ref = lax.conv_general_dilated(
        x, weight, window_strides=(1, 1),
        padding=((padding, padding), (padding, padding)),
        rhs_dilation=(dilation, dilation),
        dimension_numbers=("NCHW", "OIHW", "NCHW"))
    ref = jnp.maximum(ref + bias.reshape(1, Cout, 1, 1), 0.0)
    assert out.shape == (N, Cout, H, W)
    assert jnp.allclose(out, ref, atol=1e-4, rtol=1e-4)

    print("KERNEL_OK")
</pallas_src>

<mosaic_0001>
module attributes {stable_mosaic.version = 11 : i64} {
  func.func @_resblock_kernel_flat(%arg0: i32, %arg1: memref<40x512xf32, #tpu.memory_space<vmem>>, %arg2: memref<8x40xf32, #tpu.memory_space<vmem>>, %arg3: memref<2x8x256xf32, #tpu.memory_space<vmem>>) attributes {dimension_semantics = [#tpu.dimension_semantics<arbitrary>], iteration_bounds = array<i64: 1>, scalar_prefetch = 0 : i64, scratch_operands = 0 : i64, tpu.core_type = #tpu.core_type<tc>, window_params = [{pipeline_mode = #tpu.pipeline_mode<synchronous>, transform_indices = @transform_0, window_bounds = array<i64: 40, 512>}, {pipeline_mode = #tpu.pipeline_mode<synchronous>, transform_indices = @transform_1, window_bounds = array<i64: 8, 40>}, {pipeline_mode = #tpu.pipeline_mode<synchronous>, transform_indices = @transform_2, window_bounds = array<i64: 2, 8, 256>}]} {
    %c0 = arith.constant 0 : index
    %c0_0 = arith.constant 0 : index
    %0 = vector.load %arg2[%c0, %c0_0] : memref<8x40xf32, #tpu.memory_space<vmem>>, vector<8x40xf32>
    %c0_1 = arith.constant 0 : index
    %c0_2 = arith.constant 0 : index
    %1 = vector.load %arg1[%c0_1, %c0_2] : memref<40x512xf32, #tpu.memory_space<vmem>>, vector<40x512xf32>
    %cst = arith.constant dense<0.000000e+00> : vector<8x512xf32>
    %2 = tpu.matmul %0, %1, %cst {dimension_numbers = #tpu.dot_dimension_numbers<[1], [0], [0], [1], [0, 0, 1, 1], [], []>} : vector<8x40xf32>, vector<40x512xf32>, vector<8x512xf32> -> vector<8x512xf32>
    %cst_3 = arith.constant 0.000000e+00 : f32
    %3 = vector.broadcast %cst_3 : f32 to vector<8x512xf32>
    %4 = arith.maximumf %2, %3 : vector<8x512xf32>
    %5 = vector.extract_strided_slice %4 {offsets = [0, 0], sizes = [8, 256], strides = [1, 1]} : vector<8x512xf32> to vector<8x256xf32>
    %c0_4 = arith.constant 0 : index
    %c0_5 = arith.constant 0 : index
    %c0_6 = arith.constant 0 : index
    %6 = vector.load %arg3[%c0_4, %c0_5, %c0_6] : memref<2x8x256xf32, #tpu.memory_space<vmem>>, vector<1x8x256xf32>
    %7 = vector.shape_cast %6 : vector<1x8x256xf32> to vector<8x256xf32>
    %8 = vector.shape_cast %5 : vector<8x256xf32> to vector<1x8x256xf32>
    tpu.vector_store %arg3[%c0_4, %c0_5, %c0_6], %8 {strides = array<i32>} : memref<2x8x256xf32, #tpu.memory_space<vmem>>, vector<1x8x256xf32>,
    %9 = vector.extract_strided_slice %4 {offsets = [0, 256], sizes = [8, 256], strides = [1, 1]} : vector<8x512xf32> to vector<8x256xf32>
    %c1 = arith.constant 1 : index
    %c0_7 = arith.constant 0 : index
    %c0_8 = arith.constant 0 : index
    %10 = vector.load %arg3[%c1, %c0_7, %c0_8] : memref<2x8x256xf32, #tpu.memory_space<vmem>>, vector<1x8x256xf32>
    %11 = vector.shape_cast %10 : vector<1x8x256xf32> to vector<8x256xf32>
    %12 = vector.shape_cast %9 : vector<8x256xf32> to vector<1x8x256xf32>
    tpu.vector_store %arg3[%c1, %c0_7, %c0_8], %12 {strides = array<i32>} : memref<2x8x256xf32, #tpu.memory_space<vmem>>, vector<1x8x256xf32>,
    return
  }
  func.func @transform_0(%arg0: i32) -> (i32, i32) {
    %c0_i32 = arith.constant 0 : i32
    %c0_i32_0 = arith.constant 0 : i32
    %c0_i32_1 = arith.constant 0 : i32
    return %c0_i32, %c0_i32_0 : i32, i32
  }
  func.func @transform_1(%arg0: i32) -> (i32, i32) {
    %c0_i32 = arith.constant 0 : i32
    %c0_i32_0 = arith.constant 0 : i32
    %c0_i32_1 = arith.constant 0 : i32
    return %c0_i32, %c0_i32_0 : i32, i32
  }
  func.func @transform_2(%arg0: i32) -> (i32, i32, i32) {
    %c0_i32 = arith.constant 0 : i32
    %c0_i32_0 = arith.constant 0 : i32
    %c0_i32_1 = arith.constant 0 : i32
    %c0_i32_2 = arith.constant 0 : i32
    return %c0_i32, %c0_i32_0, %c0_i32_1 : i32, i32, i32
  }
}

</mosaic_0001>

<llo_original>
// kernel: resblock_forward.1
$region0: #{resblock_forward.1}
  #allocation0 [shape = 'u32[]', space=smem, size = 0x4, offset = 0x4, fixed_abs, tag = 'smem constant byte address 0x4 - core index']
  #allocation1 [shape = 'u32[144,128]{1,0:T(1,128)}', space=vmem, size = 0x12000, scoped, tag = 'internal scratch']
  %s0 = inlined_call_operand.vmem [shape: f32[40,512], index: 0, kind: input, shape index: {}]
  %s1 = inlined_call_operand.vmem [shape: f32[8,40], index: 1, kind: input, shape index: {}]
  %s2 = inlined_call_operand.vmem [shape: f32[2,8,256], index: 2, kind: output, shape index: {}]
  %s3 = sld [smem:[#allocation0]]
  $region18: #{resblock_forward.1} parent=0
    _
  %s5 = ssub.s32 1, %s3
  %s6 = scalar_select 0, %s5, %s3
  // Predicated region
  $region2: #{resblock_forward.1} parent=0 // pred_check
    _
  $region3: #{resblock_forward.1} parent=0 // pred_check_branch
    %8 = sbr.rel (0) target = $region5
  $region4: #{resblock_forward.1} parent=0 // pred_region
    _
  $region5: #{resblock_forward.1} parent=0 // pred_fallthru
    _
  // Predicated region
  $region6: #{resblock_forward.1} parent=0 // pred_check
    _
  $region7: #{resblock_forward.1} parent=0 // pred_check_branch
    %10 = sbr.rel (0) target = $region9
  $region8: #{resblock_forward.1} parent=0 // pred_region
    _
  $region9: #{resblock_forward.1} parent=0 // pred_fallthru
    _
  %v11 = vld [vmem:[%s1] sm:$0xff]
  %v12 = vld [vmem:[%s0] sm:$0xff]
  %v13 = vld [vmem:[%s0 + $0x8] sm:$0xff]
  %v14 = vld [vmem:[%s0 + $0x10] sm:$0xff]
  %v15 = vld [vmem:[%s0 + $0x18] sm:$0xff]
  %v16 = vld [vmem:[%s0 + $0x20] sm:$0xff]
  %v17 = vld [vmem:[%s0 + $0x28] sm:$0xff]
  %v18 = vld [vmem:[%s0 + $0x30] sm:$0xff]
  %v19 = vld [vmem:[%s0 + $0x38] sm:$0xff]
  %v20 = vld [vmem:[%s0 + $0x40] sm:$0xff]
  %v21 = vld [vmem:[%s0 + $0x48] sm:$0xff]
  %v22 = vld [vmem:[%s0 + $0x50] sm:$0xff]
  %v23 = vld [vmem:[%s0 + $0x58] sm:$0xff]
  %v24 = vld [vmem:[%s0 + $0x60] sm:$0xff]
  %v25 = vld [vmem:[%s0 + $0x68] sm:$0xff]
  %v26 = vld [vmem:[%s0 + $0x70] sm:$0xff]
  %v27 = vld [vmem:[%s0 + $0x78] sm:$0xff]
  %v28 = vld [vmem:[%s0 + $0x80] sm:$0xff]
  %v29 = vld [vmem:[%s0 + $0x88] sm:$0xff]
  %v30 = vld [vmem:[%s0 + $0x90] sm:$0xff]
  %v31 = vld [vmem:[%s0 + $0x98] sm:$0xff]
  %vm32 = vcmask 326656
  %v34 = vsel %vm32, %v11, 0
  %36 = vmatprep.subr.mxu0 %v13
  %37 = vmatpush1.msra.mxu0 %v12
  %38 = vmatprep.subr.mxu0 %v17
  %39 = vmatpush1.msra.mxu0 %v16
  %40 = vmatprep.subr.mxu0 %v21
  %41 = vmatpush1.msra.mxu0 %v20
  %42 = vmatprep.subr.mxu0 %v25
  %43 = vmatpush1.msra.mxu0 %v24
  %44 = vmatprep.subr.mxu0 %v29
  %45 = vmatpush1.msra.mxu0 %v28
  %46 = vmatprep.subr.mxu0 0.0
  %47 = vmatpush1.msra.mxu0 0.0
  %48 = vmatprep.subr.mxu0 0.0
  %49 = vmatpush1.msra.mxu0 0.0
  %50 = vmatprep.subr.mxu0 0.0
  %51 = vmatpush1.msra.mxu0 0.0
  %52 = vmatprep.subr.mxu0 0.0
  %53 = vmatpush1.msra.mxu0 0.0
  %54 = vmatprep.subr.mxu0 0.0
  %55 = vmatpush1.msra.mxu0 0.0
  %56 = vmatprep.subr.mxu0 0.0
  %57 = vmatpush1.msra.mxu0 0.0
  %58 = vmatprep.subr.mxu0 0.0
  %59 = vmatpush1.msra.mxu0 0.0
  %60 = vmatprep.subr.mxu0 0.0
  %61 = vmatpush1.msra.mxu0 0.0
  %62 = vmatprep.subr.mxu0 0.0
  %63 = vmatpush1.msra.mxu0 0.0
  %64 = vmatprep.subr.mxu0 0.0
  %65 = vmatpush1.msra.mxu0 0.0
  %66 = vmatprep.subr.mxu0 0.0
  %67 = vmatpush1.msra.mxu0 0.0
  %68 = vmatprep.subr.mxu0 0.0
  %69 = vmatpush1.msra.mxu0 0.0
  %70 = vmatprep.subr.mxu0 0.0
  %71 = vmatpush1.msra.mxu0 0.0
  %72 = vmatprep.subr.mxu0 0.0
  %73 = vmatpush1.msra.mxu0 0.0
  %74 = vmatprep.subr.mxu0 0.0
  %75 = vmatpush1.msra.mxu0 0.0
  %76 = vmatprep.subr.mxu0 0.0
  %77 = vmatpush1.msra.mxu0 0.0
  %78 = vmatprep.subr.mxu0 0.0
  %79 = vmatpush1.msra.mxu0 0.0
  %80 = vmatprep.subr.mxu0 0.0
  %81 = vmatpush1.msra.mxu0 0.0
  %82 = vmatprep.subr.mxu0 0.0
  %83 = vmatpush1.msra.mxu0 0.0
  %84 = vmatprep.subr.mxu0 0.0
  %85 = vmatpush1.msra.mxu0 0.0
  %86 = vmatprep.subr.mxu0 0.0
  %87 = vmatpush1.msra.mxu0 0.0
  %88 = vmatprep.subr.mxu0 0.0
  %89 = vmatpush1.msra.mxu0 0.0
  %90 = vmatprep.subr.mxu0 0.0
  %91 = vmatpush1.msra.mxu0 0.0
  %92 = vmatprep.subr.mxu0 0.0
  %93 = vmatpush1.msra.mxu0 0.0
  %94 = vmatprep.subr.mxu0 0.0
  %95 = vmatpush1.msra.mxu0 0.0
  %96 = vmatprep.subr.mxu0 0.0
  %97 = vmatpush1.msra.mxu0 0.0
  %98 = vmatprep.subr.mxu0 0.0
  %99 = vmatpush1.msra.mxu0 0.0
  %100 = vmatprep.mubr.f32.mxu0 0.0
  %101 = vmatmul.mubr.f32.gmra.mrb[0].mxu0 %v34
  %v102 = vpop.f32.mrb[0].mxu0
  %v103 = vadd.f32 0.0, %v102
  %v104 = vpop.f32.mrb[0].mxu0
  %v105 = vadd.f32 0.0, %v104
  %106 = vdwg.mxu0
  %107 = vmatprep.subr.mxu0 %v15
  %108 = vmatpush1.msra.mxu0 %v14
  %109 = vmatprep.subr.mxu0 %v19
  %110 = vmatpush1.msra.mxu0 %v18
  %111 = vmatprep.subr.mxu0 %v23
  %112 = vmatpush1.msra.mxu0 %v22
  %113 = vmatprep.subr.mxu0 %v27
  %114 = vmatpush1.msra.mxu0 %v26
  %115 = vmatprep.subr.mxu0 %v31
  %116 = vmatpush1.msra.mxu0 %v30
  %117 = vmatprep.subr.mxu0 0.0
  %118 = vmatpush1.msra.mxu0 0.0
  %119 = vmatprep.subr.mxu0 0.0
  %120 = vmatpush1.msra.mxu0 0.0
  %121 = vmatprep.subr.mxu0 0.0
  %122 = vmatpush1.msra.mxu0 0.0
  %123 = vmatprep.subr.mxu0 0.0
  %124 = vmatpush1.msra.mxu0 0.0
  %125 = vmatprep.subr.mxu0 0.0
  %126 = vmatpush1.msra.mxu0 0.0
  %127 = vmatprep.subr.mxu0 0.0
  %128 = vmatpush1.msra.mxu0 0.0
  %129 = vmatprep.subr.mxu0 0.0
  %130 = vmatpush1.msra.mxu0 0.0
  %131 = vmatprep.subr.mxu0 0.0
  %132 = vmatpush1.msra.mxu0 0.0
  %133 = vmatprep.subr.mxu0 0.0
  %134 = vmatpush1.msra.mxu0 0.0
  %135 = vmatprep.subr.mxu0 0.0
  %136 = vmatpush1.msra.mxu0 0.0
  %137 = vmatprep.subr.mxu0 0.0
  %138 = vmatpush1.msra.mxu0 0.0
  %139 = vmatprep.subr.mxu0 0.0
  %140 = vmatpush1.msra.mxu0 0.0
  %141 = vmatprep.subr.mxu0 0.0
  %142 = vmatpush1.msra.mxu0 0.0
  %143 = vmatprep.subr.mxu0 0.0
  %144 = vmatpush1.msra.mxu0 0.0
  %145 = vmatprep.subr.mxu0 0.0
  %146 = vmatpush1.msra.mxu0 0.0
  %147 = vmatprep.subr.mxu0 0.0
  %148 = vmatpush1.msra.mxu0 0.0
  %149 = vmatprep.subr.mxu0 0.0
  %150 = vmatpush1.msra.mxu0 0.0
  %151 = vmatprep.subr.mxu0 0.0
  %152 = vmatpush1.msra.mxu0 0.0
  %153 = vmatprep.subr.mxu0 0.0
  %154 = vmatpush1.msra.mxu0 0.0
  %155 = vmatprep.subr.mxu0 0.0
  %156 = vmatpush1.msra.mxu0 0.0
  %157 = vmatprep.subr.mxu0 0.0
  %158 = vmatpush1.msra.mxu0 0.0
  %159 = vmatprep.subr.mxu0 0.0
  %160 = vmatpush1.msra.mxu0 0.0
  %161 = vmatprep.subr.mxu0 0.0
  %162 = vmatpush1.msra.mxu0 0.0
  %163 = vmatprep.subr.mxu0 0.0
  %164 = vmatpush1.msra.mxu0 0.0
  %165 = vmatprep.subr.mxu0 0.0
  %166 = vmatpush1.msra.mxu0 0.0
  %167 = vmatprep.subr.mxu0 0.0
  %168 = vmatpush1.msra.mxu0 0.0
  %169 = vmatprep.subr.mxu0 0.0
  %170 = vmatpush1.msra.mxu0 0.0
  %171 = vmatprep.mubr.f32.mxu0 0.0
  %172 = vmatmul.mubr.f32.gmra.mrb[0].mxu0 %v34
  %v173 = vpop.f32.mrb[0].mxu0
  %v174 = vadd.f32 0.0, %v173
  %v175 = vpop.f32.mrb[0].mxu0
  %v176 = vadd.f32 0.0, %v175
  %177 = vdwg.mxu0
  %v178 = vmax.f32 %v103, 0.0
  %v179 = vmax.f32 %v105, 0.0
  %v180 = vmax.f32 %v174, 0.0
  %v181 = vmax.f32 %v176, 0.0
  %182 = vst [vmem:[%s2] sm:$0xff] %v178
  %183 = vst [vmem:[%s2 + $0x8] sm:$0xff] %v179
  %s184 = scalar_lea.vmem %s2, 16
  %185 = vst [vmem:[%s184] sm:$0xff] %v180
  %186 = vst [vmem:[%s184 + $0x8] sm:$0xff] %v181
  // Predicated region
  $region10: #{resblock_forward.1} parent=0 // pred_check
    _
  $region11: #{resblock_forward.1} parent=0 // pred_check_branch
    %188 = sbr.rel (0) target = $region13
  $region12: #{resblock_forward.1} parent=0 // pred_region
    _
  $region13: #{resblock_forward.1} parent=0 // pred_fallthru
    _
  // Predicated region
  $region14: #{resblock_forward.1} parent=0 // pred_check
    _
  $region15: #{resblock_forward.1} parent=0 // pred_check_branch
    %190 = sbr.rel (0) target = $region17
  $region16: #{resblock_forward.1} parent=0 // pred_region
    _
  $region17: #{resblock_forward.1} parent=0 // pred_fallthru
    _

</llo_original>
